<compile_context>
chip_gen: v5e
topology: v5e:2x2
jax: 0.10.0
libtpu: 0.0.40
codegen_flags: <defaults>
</compile_context>

<pallas_src>
import functools

import jax
import jax.numpy as jnp
from jax.experimental import pallas as pl
from jax.experimental.pallas import tpu as pltpu

LANES = 128


def _bce_log_terms(p, t, binary_targets):
    """Positive BCE log-terms (negated once at the very end).

    nn.BCELoss clamps each log at -100.  For hard {0,1} targets the
    single-log form is exactly equivalent and halves EUP transcendentals;
    the two-log (default) path is exact for soft targets as well.
    """
    if binary_targets:
        return jnp.maximum(jnp.log(jnp.where(t >= 0.5, p, 1.0 - p)), -100.0)
    log_p = jnp.maximum(jnp.log(p), -100.0)
    log_1mp = jnp.maximum(jnp.log(1.0 - p), -100.0)
    # == t*log_p + (1-t)*log_1mp, trimmed form (saves ~2 VALU ops/element).
    return log_1mp + t * (log_p - log_1mp)


def _bce_iou_kernel(pred_ref, tgt_ref, out_ref, acc_bce, acc_pt, acc_tot, *,
                    num_blocks, blocks_per_core, tile_rows, valid_rows_last,
                    have_phantom, binary_targets):
    c = pl.program_id(0)          # "parallel" axis (TensorCores on v7x)
    i = pl.program_id(1)          # "arbitrary" streaming-reduction axis
    blk = c * blocks_per_core + i  # global block index into the row range

    @pl.when(i == 0)
    def _():
        acc_bce[...] = jnp.zeros_like(acc_bce)
        acc_pt[...] = jnp.zeros_like(acc_pt)
        acc_tot[...] = jnp.zeros_like(acc_tot)

    p = pred_ref[...].astype(jnp.float32)
    t = tgt_ref[...].astype(jnp.float32)

    def fold(x):
        # (tile_rows, 128) -> (8, 128): sublane-major adds, no cross-lane work;
        # 1024 lane partials stay distributed for accuracy.
        return x.reshape(tile_rows // 8, 8, LANES).sum(axis=0)

    def accumulate(pv, tv):
        acc_bce[...] += fold(_bce_log_terms(pv, tv, binary_targets))
        acc_pt[...] += fold(pv * tv)
        acc_tot[...] += fold(pv + tv)

    mask_needed = valid_rows_last != tile_rows   # static Python bool

    if mask_needed:
        # Fast path: every full block — no mask arithmetic at all.
        @pl.when(blk < num_blocks - 1)
        def _():
            accumulate(p, t)

        # Slow path: only the final (partial) real block carries the row mask.
        @pl.when(blk == num_blocks - 1)
        def _():
            row = jax.lax.broadcasted_iota(jnp.int32, p.shape, 0)
            valid = row < valid_rows_last
            # (p=0, t=0) contributes exactly 0 to all three partial sums
            # (the -100 log clamp keeps the BCE term finite and zero).
            accumulate(jnp.where(valid, p, 0.0), jnp.where(valid, t, 0.0))
        # Phantom blocks (blk >= num_blocks) fall through both branches.
    elif have_phantom:
        @pl.when(blk < num_blocks)
        def _():
            accumulate(p, t)
    else:
        accumulate(p, t)

    @pl.when(i == pl.num_programs(1) - 1)
    def _():
        out_ref[0, 0, :, :] = acc_bce[...]
        out_ref[0, 1, :, :] = acc_pt[...]
        out_ref[0, 2, :, :] = acc_tot[...]


def bce_iou_loss(pred, target, smooth=1.0, *, tile_rows=8192,
                 binary_targets=False):
    """pred, target: same shape, pred in (0,1).  Returns scalar f32 loss.

    Inputs are streamed in their native dtype (feed bf16 to halve HBM traffic
    on bandwidth-bound v5e/v6e); the kernel upcasts per tile.  Set
    `binary_targets=True` only when target is hard {0,1} (exact, single log).
    """
    assert pred.shape == target.shape
    n_elems = pred.size
    smooth = jnp.float32(smooth)

    p_flat = jnp.ravel(pred)
    t_flat = jnp.ravel(target)

    rows = n_elems // LANES            # full 128-lane rows handled by kernel
    tail = n_elems - rows * LANES      # <128 leftovers handled in the wrapper

    def _sublane(dt):
        return max(8, 32 // jnp.dtype(dt).itemsize)   # 8 f32 / 16 bf16 / 32 i8

    sublane = max(_sublane(pred.dtype), _sublane(target.dtype))

    if rows < sublane:
        # Tiny input: a kernel launch is not worth it (and keeps block<=rows).
        p = p_flat.astype(jnp.float32)
        t = t_flat.astype(jnp.float32)
        bce_term_sum = jnp.sum(_bce_log_terms(p, t, binary_targets))
        inter = jnp.sum(p * t)
        total = jnp.sum(p + t)
    else:
        if tail:
            # TODO(synk): the 128-aligned prefix slice still materializes one
            # HBM copy of each input; a truly zero-copy unaligned path would
            # need 1-D blocks / manual DMA.
            p2 = p_flat[:rows * LANES].reshape(rows, LANES)
            t2 = t_flat[:rows * LANES].reshape(rows, LANES)
        else:
            p2 = p_flat.reshape(rows, LANES)   # layout-only, no HBM copy
            t2 = t_flat.reshape(rows, LANES)

        tr = min(int(tile_rows), rows)
        tr = max(sublane, (tr // sublane) * sublane)
        num_blocks = int(pl.cdiv(rows, tr))
        valid_rows_last = int(rows - (num_blocks - 1) * tr)

        # Leading "parallel" axis: 2-way TensorCore split on v7x; sequential
        # (and essentially free) on single-TC v5e/v6e.
        num_cores = 2 if num_blocks >= 2 else 1
        blocks_per_core = int(pl.cdiv(num_blocks, num_cores))
        have_phantom = num_cores * blocks_per_core != num_blocks

        itembytes = (jnp.dtype(pred.dtype).itemsize
                     + jnp.dtype(target.dtype).itemsize)
        block_bytes = tr * LANES * itembytes
        cap = 48 * 1024 * 1024                     # safe under v7x 64 MiB VMEM
        try:                                       # raise on 128 MiB parts
            cap = min(96 * 1024 * 1024,
                      int(pltpu.get_tpu_info().vmem_capacity_bytes) * 3 // 4)
        except Exception:
            pass
        vmem_limit = max(16 * 1024 * 1024,
                         min(cap, 2 * block_bytes + 4 * 1024 * 1024))

        kernel = functools.partial(
            _bce_iou_kernel,
            num_blocks=num_blocks,
            blocks_per_core=blocks_per_core,
            tile_rows=tr,
            valid_rows_last=valid_rows_last,
            have_phantom=have_phantom,
            binary_targets=binary_targets)

        def in_map(c, i):
            # Phantom blocks (last core, odd num_blocks) clamp to a valid
            # block; their accumulation is skipped in-kernel.
            return (jnp.minimum(c * blocks_per_core + i, num_blocks - 1), 0)

        cost = pl.CostEstimate(
            flops=10 * n_elems,
            transcendentals=(1 if binary_targets else 2) * n_elems,
            bytes_accessed=n_elems * itembytes + num_cores * 3 * 8 * LANES * 4)

        partials = pl.pallas_call(
            kernel,
            out_shape=jax.ShapeDtypeStruct((num_cores, 3, 8, LANES),
                                           jnp.float32),
            grid_spec=pltpu.PrefetchScalarGridSpec(
                num_scalar_prefetch=0,
                grid=(num_cores, blocks_per_core),
                in_specs=[
                    pl.BlockSpec((tr, LANES), in_map),
                    pl.BlockSpec((tr, LANES), in_map),
                ],
                out_specs=pl.BlockSpec((1, 3, 8, LANES),
                                       lambda c, i: (c, 0, 0, 0)),
                scratch_shapes=[
                    pltpu.VMEM((8, LANES), jnp.float32),  # BCE log-term partials
                    pltpu.VMEM((8, LANES), jnp.float32),  # p*t partials
                    pltpu.VMEM((8, LANES), jnp.float32),  # p+t partials
                ],
            ),
            compiler_params=pltpu.CompilerParams(
                dimension_semantics=("parallel", "arbitrary"),
                vmem_limit_bytes=int(vmem_limit),
            ),
            cost_estimate=cost,
        )(p2, t2)

        bce_term_sum = jnp.sum(partials[:, 0])
        inter = jnp.sum(partials[:, 1])
        total = jnp.sum(partials[:, 2])

        if tail:
            # <128 leftover elements: plain-JAX correction, no HBM padding.
            p_t = p_flat[rows * LANES:].astype(jnp.float32)
            t_t = t_flat[rows * LANES:].astype(jnp.float32)
            bce_term_sum = bce_term_sum + jnp.sum(
                _bce_log_terms(p_t, t_t, binary_targets))
            inter = inter + jnp.sum(p_t * t_t)
            total = total + jnp.sum(p_t + t_t)

    bce = -bce_term_sum / jnp.float32(n_elems)
    union = total - inter
    iou = (inter + smooth) / (union + smooth)
    return (1.0 - iou) + bce


def _reference(pred, target, smooth=1.0):
    p = pred.astype(jnp.float32).ravel()
    t = target.astype(jnp.float32).ravel()
    log_p = jnp.maximum(jnp.log(p), -100.0)
    log_1mp = jnp.maximum(jnp.log(1.0 - p), -100.0)
    bce = jnp.mean(-(t * log_p + (1.0 - t) * log_1mp))
    inter = jnp.sum(p * t)
    union = jnp.sum(p + t) - inter
    iou_loss = 1.0 - (inter + smooth) / (union + smooth)
    return iou_loss + bce


if __name__ == "__main__":
    key = jax.random.PRNGKey(0)
    k1, k2, k3, k4 = jax.random.split(key, 4)

    # Primary case: NCHW = (2, 4, 16, 16), lane-aligned -> zero-copy kernel path.
    N, C, H, W = 2, 4, 16, 16
    pred = jax.nn.sigmoid(jax.random.normal(k1, (N, C, H, W), dtype=jnp.float32))
    target = (jax.random.uniform(k2, (N, C, H, W)) > 0.5).astype(jnp.float32)

    loss = jax.block_until_ready(bce_iou_loss(pred, target))
    ref = jax.block_until_ready(_reference(pred, target))
    assert jnp.allclose(loss, ref, rtol=1e-5, atol=1e-5), (loss, ref)

    # Exact single-log path for hard {0,1} targets.
    loss_bin = jax.block_until_ready(
        bce_iou_loss(pred, target, binary_targets=True))
    assert jnp.allclose(loss_bin, ref, rtol=1e-5, atol=1e-5), (loss_bin, ref)

    # Unaligned case: exercises the masked final block, the 2-way core split
    # and the wrapper-side lane-tail correction.
    pred2 = jax.nn.sigmoid(jax.random.normal(k3, (4, 3, 17, 16), dtype=jnp.float32))
    target2 = (jax.random.uniform(k4, (4, 3, 17, 16)) > 0.5).astype(jnp.float32)
    loss2 = jax.block_until_ready(bce_iou_loss(pred2, target2))
    ref2 = jax.block_until_ready(_reference(pred2, target2))
    assert jnp.allclose(loss2, ref2, rtol=1e-5, atol=1e-5), (loss2, ref2)

    print("KERNEL_OK")
</pallas_src>

<mosaic_0001>
module attributes {stable_mosaic.version = 11 : i64} {
  func.func @_bce_iou_kernel(%arg0: i32, %arg1: i32, %arg2: memref<16x128xf32, #tpu.memory_space<vmem>>, %arg3: memref<16x128xf32, #tpu.memory_space<vmem>>, %arg4: memref<1x3x8x128xf32, #tpu.memory_space<vmem>>, %arg5: memref<8x128xf32, #tpu.memory_space<vmem>>, %arg6: memref<8x128xf32, #tpu.memory_space<vmem>>, %arg7: memref<8x128xf32, #tpu.memory_space<vmem>>) attributes {dimension_semantics = [#tpu.dimension_semantics<parallel>, #tpu.dimension_semantics<arbitrary>], iteration_bounds = array<i64: 1, 1>, scalar_prefetch = 0 : i64, scratch_operands = 3 : i64, tpu.core_type = #tpu.core_type<tc>, window_params = [{transform_indices = @transform_0, window_bounds = array<i64: 16, 128>}, {transform_indices = @transform_1, window_bounds = array<i64: 16, 128>}, {transform_indices = @transform_2, window_bounds = array<i64: 1, 3, 8, 128>}]} {
    %c0_i32 = arith.constant 0 : i32
    %0 = arith.cmpi eq, %arg1, %c0_i32 : i32
    %1 = arith.extui %0 : i1 to i32
    %c0_i32_0 = arith.constant 0 : i32
    %2 = arith.cmpi ne, %1, %c0_i32_0 : i32
    scf.if %2 {
      %cst_23 = arith.constant 0.000000e+00 : f32
      %36 = vector.broadcast %cst_23 : f32 to vector<8x128xf32>
      %c0_24 = arith.constant 0 : index
      %c0_25 = arith.constant 0 : index
      %37 = vector.load %arg5[%c0_24, %c0_25] : memref<8x128xf32, #tpu.memory_space<vmem>>, vector<8x128xf32>
      tpu.vector_store %arg5[%c0_24, %c0_25], %36 {strides = array<i32>} : memref<8x128xf32, #tpu.memory_space<vmem>>, vector<8x128xf32>,
      %cst_26 = arith.constant 0.000000e+00 : f32
      %38 = vector.broadcast %cst_26 : f32 to vector<8x128xf32>
      %c0_27 = arith.constant 0 : index
      %c0_28 = arith.constant 0 : index
      %39 = vector.load %arg6[%c0_27, %c0_28] : memref<8x128xf32, #tpu.memory_space<vmem>>, vector<8x128xf32>
      tpu.vector_store %arg6[%c0_27, %c0_28], %38 {strides = array<i32>} : memref<8x128xf32, #tpu.memory_space<vmem>>, vector<8x128xf32>,
      %cst_29 = arith.constant 0.000000e+00 : f32
      %40 = vector.broadcast %cst_29 : f32 to vector<8x128xf32>
      %c0_30 = arith.constant 0 : index
      %c0_31 = arith.constant 0 : index
      %41 = vector.load %arg7[%c0_30, %c0_31] : memref<8x128xf32, #tpu.memory_space<vmem>>, vector<8x128xf32>
      tpu.vector_store %arg7[%c0_30, %c0_31], %40 {strides = array<i32>} : memref<8x128xf32, #tpu.memory_space<vmem>>, vector<8x128xf32>,
    } else {
    }
    %c0 = arith.constant 0 : index
    %c0_1 = arith.constant 0 : index
    %3 = vector.load %arg2[%c0, %c0_1] : memref<16x128xf32, #tpu.memory_space<vmem>>, vector<16x128xf32>
    %c0_2 = arith.constant 0 : index
    %c0_3 = arith.constant 0 : index
    %4 = vector.load %arg3[%c0_2, %c0_3] : memref<16x128xf32, #tpu.memory_space<vmem>>, vector<16x128xf32>
    %c0_4 = arith.constant 0 : index
    %c0_5 = arith.constant 0 : index
    %5 = vector.load %arg5[%c0_4, %c0_5] : memref<8x128xf32, #tpu.memory_space<vmem>>, vector<8x128xf32>
    %6 = math.log %3 : vector<16x128xf32>
    %cst = arith.constant -1.000000e+02 : f32
    %7 = vector.broadcast %cst : f32 to vector<16x128xf32>
    %8 = arith.maximumf %6, %7 : vector<16x128xf32>
    %cst_6 = arith.constant 1.000000e+00 : f32
    %9 = vector.broadcast %cst_6 : f32 to vector<16x128xf32>
    %10 = arith.subf %9, %3 : vector<16x128xf32>
    %11 = math.log %10 : vector<16x128xf32>
    %cst_7 = arith.constant -1.000000e+02 : f32
    %12 = vector.broadcast %cst_7 : f32 to vector<16x128xf32>
    %13 = arith.maximumf %11, %12 : vector<16x128xf32>
    %14 = arith.subf %8, %13 : vector<16x128xf32>
    %15 = arith.mulf %4, %14 : vector<16x128xf32>
    %16 = arith.addf %13, %15 : vector<16x128xf32>
    %17 = vector.shape_cast %16 : vector<16x128xf32> to vector<2x8x128xf32>
    %cst_8 = arith.constant dense<0.000000e+00> : vector<8x128xf32>
    %18 = vector.multi_reduction <add>, %17, %cst_8 [0] : vector<2x8x128xf32> to vector<8x128xf32>
    %19 = arith.addf %5, %18 : vector<8x128xf32>
    %c0_9 = arith.constant 0 : index
    %c0_10 = arith.constant 0 : index
    %20 = vector.load %arg5[%c0_9, %c0_10] : memref<8x128xf32, #tpu.memory_space<vmem>>, vector<8x128xf32>
    tpu.vector_store %arg5[%c0_9, %c0_10], %19 {strides = array<i32>} : memref<8x128xf32, #tpu.memory_space<vmem>>, vector<8x128xf32>,
    %c0_11 = arith.constant 0 : index
    %c0_12 = arith.constant 0 : index
    %21 = vector.load %arg6[%c0_11, %c0_12] : memref<8x128xf32, #tpu.memory_space<vmem>>, vector<8x128xf32>
    %22 = arith.mulf %3, %4 : vector<16x128xf32>
    %23 = vector.shape_cast %22 : vector<16x128xf32> to vector<2x8x128xf32>
    %cst_13 = arith.constant dense<0.000000e+00> : vector<8x128xf32>
    %24 = vector.multi_reduction <add>, %23, %cst_13 [0] : vector<2x8x128xf32> to vector<8x128xf32>
    %25 = arith.addf %21, %24 : vector<8x128xf32>
    %c0_14 = arith.constant 0 : index
    %c0_15 = arith.constant 0 : index
    %26 = vector.load %arg6[%c0_14, %c0_15] : memref<8x128xf32, #tpu.memory_space<vmem>>, vector<8x128xf32>
    tpu.vector_store %arg6[%c0_14, %c0_15], %25 {strides = array<i32>} : memref<8x128xf32, #tpu.memory_space<vmem>>, vector<8x128xf32>,
    %c0_16 = arith.constant 0 : index
    %c0_17 = arith.constant 0 : index
    %27 = vector.load %arg7[%c0_16, %c0_17] : memref<8x128xf32, #tpu.memory_space<vmem>>, vector<8x128xf32>
    %28 = arith.addf %3, %4 : vector<16x128xf32>
    %29 = vector.shape_cast %28 : vector<16x128xf32> to vector<2x8x128xf32>
    %cst_18 = arith.constant dense<0.000000e+00> : vector<8x128xf32>
    %30 = vector.multi_reduction <add>, %29, %cst_18 [0] : vector<2x8x128xf32> to vector<8x128xf32>
    %31 = arith.addf %27, %30 : vector<8x128xf32>
    %c0_19 = arith.constant 0 : index
    %c0_20 = arith.constant 0 : index
    %32 = vector.load %arg7[%c0_19, %c0_20] : memref<8x128xf32, #tpu.memory_space<vmem>>, vector<8x128xf32>
    tpu.vector_store %arg7[%c0_19, %c0_20], %31 {strides = array<i32>} : memref<8x128xf32, #tpu.memory_space<vmem>>, vector<8x128xf32>,
    %c0_i32_21 = arith.constant 0 : i32
    %33 = arith.cmpi eq, %arg1, %c0_i32_21 : i32
    %34 = arith.extui %33 : i1 to i32
    %c0_i32_22 = arith.constant 0 : i32
    %35 = arith.cmpi ne, %34, %c0_i32_22 : i32
    scf.if %35 {
      %c0_23 = arith.constant 0 : index
      %c0_24 = arith.constant 0 : index
      %36 = vector.load %arg5[%c0_23, %c0_24] : memref<8x128xf32, #tpu.memory_space<vmem>>, vector<8x128xf32>
      %c0_25 = arith.constant 0 : index
      %c0_26 = arith.constant 0 : index
      %c0_27 = arith.constant 0 : index
      %c0_28 = arith.constant 0 : index
      %37 = vector.load %arg4[%c0_25, %c0_26, %c0_27, %c0_28] : memref<1x3x8x128xf32, #tpu.memory_space<vmem>>, vector<1x1x8x128xf32>
      %38 = vector.shape_cast %37 : vector<1x1x8x128xf32> to vector<8x128xf32>
      %39 = vector.shape_cast %36 : vector<8x128xf32> to vector<1x1x8x128xf32>
      tpu.vector_store %arg4[%c0_25, %c0_26, %c0_27, %c0_28], %39 {strides = array<i32>} : memref<1x3x8x128xf32, #tpu.memory_space<vmem>>, vector<1x1x8x128xf32>,
      %c0_29 = arith.constant 0 : index
      %c0_30 = arith.constant 0 : index
      %40 = vector.load %arg6[%c0_29, %c0_30] : memref<8x128xf32, #tpu.memory_space<vmem>>, vector<8x128xf32>
      %c0_31 = arith.constant 0 : index
      %c1 = arith.constant 1 : index
      %c0_32 = arith.constant 0 : index
      %c0_33 = arith.constant 0 : index
      %41 = vector.load %arg4[%c0_31, %c1, %c0_32, %c0_33] : memref<1x3x8x128xf32, #tpu.memory_space<vmem>>, vector<1x1x8x128xf32>
      %42 = vector.shape_cast %41 : vector<1x1x8x128xf32> to vector<8x128xf32>
      %43 = vector.shape_cast %40 : vector<8x128xf32> to vector<1x1x8x128xf32>
      tpu.vector_store %arg4[%c0_31, %c1, %c0_32, %c0_33], %43 {strides = array<i32>} : memref<1x3x8x128xf32, #tpu.memory_space<vmem>>, vector<1x1x8x128xf32>,
      %c0_34 = arith.constant 0 : index
      %c0_35 = arith.constant 0 : index
      %44 = vector.load %arg7[%c0_34, %c0_35] : memref<8x128xf32, #tpu.memory_space<vmem>>, vector<8x128xf32>
      %c0_36 = arith.constant 0 : index
      %c2 = arith.constant 2 : index
      %c0_37 = arith.constant 0 : index
      %c0_38 = arith.constant 0 : index
      %45 = vector.load %arg4[%c0_36, %c2, %c0_37, %c0_38] : memref<1x3x8x128xf32, #tpu.memory_space<vmem>>, vector<1x1x8x128xf32>
      %46 = vector.shape_cast %45 : vector<1x1x8x128xf32> to vector<8x128xf32>
      %47 = vector.shape_cast %44 : vector<8x128xf32> to vector<1x1x8x128xf32>
      tpu.vector_store %arg4[%c0_36, %c2, %c0_37, %c0_38], %47 {strides = array<i32>} : memref<1x3x8x128xf32, #tpu.memory_space<vmem>>, vector<1x1x8x128xf32>,
    } else {
    }
    return
  }
  func.func @transform_0(%arg0: i32, %arg1: i32) -> (i32, i32) {
    %c1_i32 = arith.constant 1 : i32
    %0 = arith.muli %arg0, %c1_i32 : i32
    %1 = arith.addi %0, %arg1 : i32
    %c0_i32 = arith.constant 0 : i32
    %2 = arith.minsi %1, %c0_i32 : i32
    %c0_i32_0 = arith.constant 0 : i32
    %c0_i32_1 = arith.constant 0 : i32
    return %2, %c0_i32_0 : i32, i32
  }
  func.func @transform_1(%arg0: i32, %arg1: i32) -> (i32, i32) {
    %c1_i32 = arith.constant 1 : i32
    %0 = arith.muli %arg0, %c1_i32 : i32
    %1 = arith.addi %0, %arg1 : i32
    %c0_i32 = arith.constant 0 : i32
    %2 = arith.minsi %1, %c0_i32 : i32
    %c0_i32_0 = arith.constant 0 : i32
    %c0_i32_1 = arith.constant 0 : i32
    return %2, %c0_i32_0 : i32, i32
  }
  func.func @transform_2(%arg0: i32, %arg1: i32) -> (i32, i32, i32, i32) {
    %c0_i32 = arith.constant 0 : i32
    %c0_i32_0 = arith.constant 0 : i32
    %c0_i32_1 = arith.constant 0 : i32
    %c0_i32_2 = arith.constant 0 : i32
    return %arg0, %c0_i32, %c0_i32_0, %c0_i32_1 : i32, i32, i32, i32
  }
}

</mosaic_0001>

<llo_original>
// kernel: tpu_custom_call.1
$region0: #{tpu_custom_call.1}
  #allocation0 [shape = 'u32[]', space=smem, size = 0x4, offset = 0x4, fixed_abs, tag = 'smem constant byte address 0x4 - core index']
  #allocation1 [shape = 'u32[72,128]{1,0:T(1,128)}', space=vmem, size = 0x9000, scoped, tag = 'internal scratch']
  #allocation2 [shape = 'f32[8,128]{1,0:T(8,128)}', space=vmem, size = 0x1000, scoped, tag = 'scratch operand']
  #allocation3 [shape = 'f32[8,128]{1,0:T(8,128)}', space=vmem, size = 0x1000, scoped, tag = 'scratch operand']
  #allocation4 [shape = 'f32[8,128]{1,0:T(8,128)}', space=vmem, size = 0x1000, scoped, tag = 'scratch operand']
  %s0 = inlined_call_operand.hbm [shape: f32[16,128], index: 0, kind: input, shape index: {}]
  %s1 = inlined_call_operand.hbm [shape: f32[16,128], index: 1, kind: input, shape index: {}]
  %s2 = inlined_call_operand.hbm [shape: f32[1,3,8,128], index: 2, kind: output, shape index: {}]
  %s3 = sld [smem:[#allocation0]]
  $region34: #{tpu_custom_call.1} parent=0
    _
  %s5 = ssub.s32 1, %s3
  %s6 = scalar_select 0, %s5, %s3
  $region1: #{tpu_custom_call.1} parent=0
    #allocation5 [shape = 'u8[8192]{0}', space=vmem, size = 0x2000, scoped, tag = 'input window, operand 0, single buffered']
    #allocation6 [shape = 's32[1]{0}', space=sflag, size = 0x4, scoped, tag = 'scoped memory for tpu_custom_call.1']
    #allocation7 [shape = 's32[1]{0}', space=sflag, size = 0x4, scoped, tag = 'scoped memory for tpu_custom_call.1']
    #allocation8 [shape = 'u8[8192]{0}', space=vmem, size = 0x2000, scoped, tag = 'input window, operand 1, single buffered']
    #allocation9 [shape = 's32[1]{0}', space=sflag, size = 0x4, scoped, tag = 'scoped memory for tpu_custom_call.1']
    #allocation10 [shape = 'u8[12288]{0}', space=vmem, size = 0x3000, scoped, tag = 'output window, operand 0, single buffered']
    %7 = vsyncpa [#allocation6], 0
    %8 = vsyncpa [#allocation9], 0
    %9 = vsyncpa [#allocation7], 0
    // Predicated region
    $region2: #{tpu_custom_call.1} parent=1 // pred_check
      _
    $region3: #{tpu_custom_call.1} parent=1 // pred_check_branch
      %11 = sbr.rel (0) target = $region5
    $region4: #{tpu_custom_call.1} parent=1 // pred_region
      %s12 = sadd.s32 0, 0
      %p13 = scmp.lt.s32.totalorder %s12, 0
      %s14 = scalar_select %p13, %s12, 0
      %s15 = smul.u32 2, %s14
      %17 = vsyncadd [#allocation6], 0
      %s18 = smul.addr %s15, 8
      %s19 = scalar_lea.hbm %s0, %s18
      %s20 = sshll.u32 %s19, 4
      %s21 = int_to_ptr.hbm [resolvable:$true] %s20
      %s22 = sshll.u32 [#allocation5], 4
      %s23 = int_to_ptr.vmem [resolvable:$true] %s22
      %28 = dma.hbm_to_vmem [thread:$0]  %s21, 256, %s23, [#allocation6], 128, 128, 8
    $region5: #{tpu_custom_call.1} parent=1 // pred_fallthru
      _
    // Predicated region
    $region6: #{tpu_custom_call.1} parent=1 // pred_check
      _
    $region7: #{tpu_custom_call.1} parent=1 // pred_check_branch
      %30 = sbr.rel (0) target = $region9
    $region8: #{tpu_custom_call.1} parent=1 // pred_region
      %s31 = sadd.s32 0, 0
      %p32 = scmp.lt.s32.totalorder %s31, 0
      %s33 = scalar_select %p32, %s31, 0
      %s34 = smul.u32 2, %s33
      %36 = vsyncadd [#allocation9], 0
      %s37 = smul.addr %s34, 8
      %s38 = scalar_lea.hbm %s1, %s37
      %s39 = sshll.u32 %s38, 4
      %s40 = int_to_ptr.hbm [resolvable:$true] %s39
      %s41 = sshll.u32 [#allocation8], 4
      %s42 = int_to_ptr.vmem [resolvable:$true] %s41
      %47 = dma.hbm_to_vmem [thread:$0]  %s40, 256, %s42, [#allocation9], 128, 128, 8
    $region9: #{tpu_custom_call.1} parent=1 // pred_fallthru
      _
    // Predicated region
    $region10: #{tpu_custom_call.1} parent=1 // pred_check
      _
    $region11: #{tpu_custom_call.1} parent=1 // pred_check_branch
      %49 = sbr.rel (0) target = $region13
    $region12: #{tpu_custom_call.1} parent=1 // pred_region
      %51 = dma.done [#allocation6], 256
    $region13: #{tpu_custom_call.1} parent=1 // pred_fallthru
      _
    // Predicated region
    $region14: #{tpu_custom_call.1} parent=1 // pred_check
      _
    $region15: #{tpu_custom_call.1} parent=1 // pred_check_branch
      %53 = sbr.rel (0) target = $region17
    $region16: #{tpu_custom_call.1} parent=1 // pred_region
      %55 = dma.done [#allocation9], 256
    $region17: #{tpu_custom_call.1} parent=1 // pred_fallthru
      _
    %s56 = sadd.s32 0, 0
    %p57 = scmp.lt.s32.totalorder %s56, 0
    %s58 = scalar_select %p57, %s56, 0
    %s59 = smul.u32 2, %s58
    %s60 = sadd.s32 0, 0
    %p61 = scmp.lt.s32.totalorder %s60, 0
    %s62 = scalar_select %p61, %s60, 0
    %s63 = smul.u32 2, %s62
    %p64 = scmp.eq.s32.totalorder 0, 0
    // Predicated region
    $region18: #{tpu_custom_call.1} parent=1 // pred_check
      %p65 = pneg %p64
    $region19: #{tpu_custom_call.1} parent=1 // pred_check_branch
      %67 = sbr.rel (%p65) target = $region21
    $region20: #{tpu_custom_call.1} parent=1 // pred_region
      %68 = vst [vmem:[#allocation2] sm:$0xff] 0.0
      %69 = vst [vmem:[#allocation3] sm:$0xff] 0.0
      %70 = vst [vmem:[#allocation4] sm:$0xff] 0.0
    $region21: #{tpu_custom_call.1} parent=1 // pred_fallthru
      _
    %v71 = vld [vmem:[#allocation5] sm:$0xff]
    %v72 = vld [vmem:[#allocation5 + $0x8] sm:$0xff]
    %v73 = vld [vmem:[#allocation8] sm:$0xff]
    %v74 = vld [vmem:[#allocation8 + $0x8] sm:$0xff]
    %v75 = vld [vmem:[#allocation2] sm:$0xff]
    %v76 = vlog2.pop %v71
    %v77 = vmul.f32 %v76, 0.6931472
    %v78 = vlog2.pop %v72
    %v79 = vmul.f32 %v78, 0.6931472
    %v80 = vmax.f32 %v77, -100.0
    %v81 = vmax.f32 %v79, -100.0
    %v82 = vsub.f32 1.0, %v71
    %v83 = vsub.f32 1.0, %v72
    %v84 = vlog2.pop %v82
    %v85 = vmul.f32 %v84, 0.6931472
    %v86 = vlog2.pop %v83
    %v87 = vmul.f32 %v86, 0.6931472
    %v88 = vmax.f32 %v85, -100.0
    %v89 = vmax.f32 %v87, -100.0
    %v90 = vsub.f32 %v80, %v88
    %v91 = vsub.f32 %v81, %v89
    %v92 = vmul.f32 %v73, %v90
    %v93 = vmul.f32 %v74, %v91
    %v94 = vadd.f32 %v88, %v92
    %v95 = vadd.f32 %v89, %v93
    %v96 = vadd.f32 %v94, %v95
    %v97 = vadd.f32 %v75, %v96
    %98 = vst [vmem:[#allocation2] sm:$0xff] %v97
    %v99 = vld [vmem:[#allocation3] sm:$0xff]
    %v100 = vmul.f32 %v71, %v73
    %v101 = vmul.f32 %v72, %v74
    %v102 = vadd.f32 %v100, %v101
    %v103 = vadd.f32 %v99, %v102
    %104 = vst [vmem:[#allocation3] sm:$0xff] %v103
    %v105 = vld [vmem:[#allocation4] sm:$0xff]
    %v106 = vadd.f32 %v71, %v73
    %v107 = vadd.f32 %v72, %v74
    %v108 = vadd.f32 %v106, %v107
    %v109 = vadd.f32 %v105, %v108
    %110 = vst [vmem:[#allocation4] sm:$0xff] %v109
    // Predicated region
    $region22: #{tpu_custom_call.1} parent=1 // pred_check
      %p111 = pneg %p64
    $region23: #{tpu_custom_call.1} parent=1 // pred_check_branch
      %113 = sbr.rel (%p111) target = $region25
    $region24: #{tpu_custom_call.1} parent=1 // pred_region
      %v114 = vld [vmem:[#allocation2] sm:$0xff]
      %115 = vst [vmem:[#allocation10] sm:$0xff] %v114
      %v116 = vld [vmem:[#allocation3] sm:$0xff]
      %s117 = scalar_lea.vmem [#allocation10], 8
      %118 = vst [vmem:[%s117] sm:$0xff] %v116
      %v119 = vld [vmem:[#allocation4] sm:$0xff]
      %s120 = scalar_lea.vmem [#allocation10], 16
      %121 = vst [vmem:[%s120] sm:$0xff] %v119
    $region25: #{tpu_custom_call.1} parent=1 // pred_fallthru
      _
    // Predicated region
    $region26: #{tpu_custom_call.1} parent=1 // pred_check
      _
    $region27: #{tpu_custom_call.1} parent=1 // pred_check_branch
      %123 = sbr.rel (0) target = $region29
    $region28: #{tpu_custom_call.1} parent=1 // pred_region
      %125 = vsyncadd [#allocation7], 0
      %s126 = sshll.u32 [#allocation10], 4
      %s127 = int_to_ptr.vmem [resolvable:$true] %s126
      %s128 = sshll.u32 %s2, 4
      %s129 = int_to_ptr.hbm [resolvable:$true] %s128
      %134 = dma.vmem_to_hbm [thread:$0]  %s127, 384, %s129, [#allocation7], 128, 128, 8
    $region29: #{tpu_custom_call.1} parent=1 // pred_fallthru
      _
    // Predicated region
    $region30: #{tpu_custom_call.1} parent=1 // pred_check
      _
    $region31: #{tpu_custom_call.1} parent=1 // pred_check_branch
      %136 = sbr.rel (0) target = $region33
    $region32: #{tpu_custom_call.1} parent=1 // pred_region
      %138 = dma.done [#allocation7], 384
    $region33: #{tpu_custom_call.1} parent=1 // pred_fallthru
      _
    %139 = vsyncpa [#allocation6], 1
    %140 = vsyncpa [#allocation9], 1
    %141 = vsyncpa [#allocation7], 1

</llo_original>
